<compile_context>
chip_gen: v7x
topology: tpu7x:2x2x1
jax: 0.10.0
libtpu: 0.0.40
codegen_flags: <defaults>
</compile_context>

<pallas_src>
import functools

import jax
import jax.numpy as jnp
from jax import lax
from jax.experimental import pallas as pl
from jax.experimental.pallas import tpu as pltpu

EPS = 1e-5
NEG_SLOPE = 0.01


# ---------------------------------------------------------------------------
# Pass 1: BatchNorm1d batch statistics (training mode, biased variance).
# ---------------------------------------------------------------------------
def bn_stats_kernel(x_ref, mean_ref, rstd_ref, *, count):
    """Accumulate per-channel sum / sumsq over the batch grid axis; finalize
    to mean / rstd on the last step (accumulator output, constant index_map).
    Note: single-pass E[x^2]-E[x]^2 in f32 can drift a few ULPs for very long
    N*L; acceptable for this module's shapes."""
    @pl.when(pl.program_id(0) == 0)
    def _():
        mean_ref[...] = jnp.zeros_like(mean_ref)
        rstd_ref[...] = jnp.zeros_like(rstd_ref)

    x = x_ref[...].astype(jnp.float32)                      # (C, L)
    mean_ref[...] += jnp.sum(x, axis=1, keepdims=True)      # running sum
    rstd_ref[...] += jnp.sum(x * x, axis=1, keepdims=True)  # running sumsq

    @pl.when(pl.program_id(0) == pl.num_programs(0) - 1)
    def _():
        m = mean_ref[...] * (1.0 / count)
        v = rstd_ref[...] * (1.0 / count) - m * m           # biased variance
        mean_ref[...] = m
        rstd_ref[...] = lax.rsqrt(v + EPS)


# ---------------------------------------------------------------------------
# Pass 2: normalize -> conv1 -> conv2 -> LeakyReLU -> residual add.
# ---------------------------------------------------------------------------
def _conv1d_same(y, w_ref, bias, masks, use_mxu):
    """'Same' 1D convolution of one sample.

    y:     (C, L) f32 activations, L on the lane axis.
    w_ref: (K, O, C) bf16 ref (MXU path) or (K*C, O, 1) f32 ref (VPU path).
    bias:  (O, 1) f32.
    masks: {tap offset d != 0: (1, L) bool} zeroing taps outside the sample.
    """
    C, L = y.shape
    if use_mxu:
        K, O, _ = w_ref.shape
    else:
        KC, O, _ = w_ref.shape
        K = KC // C
    pad = K // 2

    acc = jnp.zeros((O, L), jnp.float32)
    for t in range(K):                       # K tiny & static -> unrolled
        d = t - pad                          # tap offset in [-pad, pad]
        if d == 0:
            y_tap = y
        else:
            # XLU lane rotation + one VPU mask; amount is mod the per-sample L.
            y_tap = jnp.where(masks[d],
                              pltpu.roll(y, shift=(-d) % L, axis=1), 0.0)
        if use_mxu:
            # One (O, C) @ (C, L) MXU matmul per tap: bf16 in, f32 accumulate.
            acc = acc + jnp.dot(w_ref[t], y_tap.astype(w_ref.dtype),
                                preferred_element_type=jnp.float32)
        else:
            # Tiny channel counts: MXU would be >95% idle, so do C broadcast
            # FMAs per tap on the VPU: (O,1) weight column x (1,L) input row.
            for c in range(C):
                acc = acc + w_ref[t * C + c] * y_tap[c:c + 1, :]
    return acc + bias                        # bias added once, after tap loop


def resblock_kernel(x_ref, scale_ref, offset_ref, w1_ref, b1_ref,
                    w2_ref, b2_ref, o_ref, *, use_mxu):
    x = x_ref[...].astype(jnp.float32)       # (C, L); f32 math in-kernel
    C, L = x.shape

    # BatchNorm1d with precomputed batch stats folded into scale/offset.
    y = x * scale_ref[...] + offset_ref[...]

    # Boundary masks built once and reused by both convs; one compare per tap.
    K = w1_ref.shape[0] if use_mxu else w1_ref.shape[0] // C
    pad = K // 2
    col = lax.broadcasted_iota(jnp.int32, (1, L), 1)
    masks = {}
    for d in range(-pad, pad + 1):
        if d > 0:
            masks[d] = col < (L - d)
        elif d < 0:
            masks[d] = col >= (-d)

    h = _conv1d_same(y, w1_ref, b1_ref[...], masks, use_mxu)
    h = _conv1d_same(h, w2_ref, b2_ref[...], masks, use_mxu)

    # LeakyReLU (default slope 0.01) + residual.
    h = jnp.where(h >= 0.0, h, NEG_SLOPE * h)
    o_ref[...] = (x + h).astype(o_ref.dtype)


# ---------------------------------------------------------------------------
# Wrapper
# ---------------------------------------------------------------------------
def resblock_for_mfl(x, gamma, beta, w1, b1, w2, b2):
    """x: (N, C, L); w*: (O, C, K); b*: (O,); gamma/beta: (C,)."""
    N, C, L = x.shape
    O, Ci, K = w1.shape
    assert O == C == Ci, "residual add requires out_channels == in_channels"
    assert K % 2 == 1, "'same' output length (padding=k//2) requires odd k"

    itemsize = x.dtype.itemsize
    # Per-step working set: double-buffered in/out blocks + ~12 f32 temps +
    # both conv weights + slack; clamp to something legal on every generation.
    est = (4 * C * L * itemsize + 12 * C * L * 4 + 4 * K * O * C * 4
           + (1 << 20))
    vmem_limit = int(min(max(est, 16 << 20), 64 << 20))

    def cparams(sem):
        return pltpu.CompilerParams(dimension_semantics=sem,
                                    vmem_limit_bytes=vmem_limit)

    # ---- pass 1: per-channel batch statistics ----
    mean, rstd = pl.pallas_call(
        functools.partial(bn_stats_kernel, count=float(N * L)),
        grid=(N,),
        in_specs=[pl.BlockSpec((pl.Squeezed(), C, L), lambda n: (n, 0, 0))],
        out_specs=[pl.BlockSpec((C, 1), lambda n: (0, 0)),
                   pl.BlockSpec((C, 1), lambda n: (0, 0))],
        out_shape=[jax.ShapeDtypeStruct((C, 1), jnp.float32),
                   jax.ShapeDtypeStruct((C, 1), jnp.float32)],
        compiler_params=cparams(("arbitrary",)),  # outputs accumulate over N
    )(x)

    # Fold gamma/beta/mean/rstd into one per-channel scale/offset (tiny XLA).
    scale = rstd * gamma.reshape(C, 1).astype(jnp.float32)
    offset = beta.reshape(C, 1).astype(jnp.float32) - mean * scale

    # ---- pass 2: normalize -> conv -> conv -> LeakyReLU -> +x ----
    use_mxu = (C * O) >= 1024      # tiny channel counts take the VPU FMA path
    if use_mxu:
        w1_k = jnp.transpose(w1, (2, 0, 1)).astype(jnp.bfloat16)   # (K, O, C)
        w2_k = jnp.transpose(w2, (2, 0, 1)).astype(jnp.bfloat16)
        w_shape = (K, O, C)
    else:
        w1_k = jnp.transpose(w1, (2, 1, 0)).reshape(K * C, O, 1) \
                  .astype(jnp.float32)                             # (K*C, O, 1)
        w2_k = jnp.transpose(w2, (2, 1, 0)).reshape(K * C, O, 1) \
                  .astype(jnp.float32)
        w_shape = (K * C, O, 1)
    b1_k = b1.reshape(O, 1).astype(jnp.float32)
    b2_k = b2.reshape(O, 1).astype(jnp.float32)

    x_spec = pl.BlockSpec((pl.Squeezed(), C, L), lambda n: (n, 0, 0))
    par_spec = pl.BlockSpec((C, 1), lambda n: (0, 0))
    bias_spec = pl.BlockSpec((O, 1), lambda n: (0, 0))
    w_spec = pl.BlockSpec(w_shape, lambda n: (0,) * len(w_shape))

    cost = pl.CostEstimate(
        flops=int(4 * N * C * O * K * L + 12 * N * C * L),
        transcendentals=0,
        bytes_accessed=int(2 * N * C * L * itemsize + 2 * K * O * C * 4))

    out = pl.pallas_call(
        functools.partial(resblock_kernel, use_mxu=use_mxu),
        grid=(N,),
        in_specs=[x_spec, par_spec, par_spec,
                  w_spec, bias_spec, w_spec, bias_spec],
        out_specs=pl.BlockSpec((pl.Squeezed(), C, L), lambda n: (n, 0, 0)),
        out_shape=jax.ShapeDtypeStruct((N, C, L), x.dtype),
        compiler_params=cparams(("parallel",)),   # samples independent ->
                                                  # both v7x TCs can take them
        cost_estimate=cost,
        input_output_aliases={0: 0},              # output keeps x layout/dtype
    )(x, scale, offset, w1_k, b1_k, w2_k, b2_k)
    return out


# ---------------------------------------------------------------------------
# Pure-JAX reference matching PyTorch train-mode semantics (sanity check).
# ---------------------------------------------------------------------------
def _reference(x, gamma, beta, w1, b1, w2, b2, k):
    mean = x.mean(axis=(0, 2), keepdims=True)
    var = ((x - mean) ** 2).mean(axis=(0, 2), keepdims=True)
    y = (x - mean) / jnp.sqrt(var + EPS) * gamma[None, :, None] \
        + beta[None, :, None]
    pad = k // 2

    def conv(z, w, b):
        out = lax.conv_general_dilated(
            z, w, window_strides=(1,), padding=[(pad, pad)],
            dimension_numbers=("NCH", "OIH", "NCH"))
        return out + b[None, :, None]

    h = conv(y, w1, b1)
    h = conv(h, w2, b2)
    h = jnp.where(h >= 0.0, h, NEG_SLOPE * h)
    return x + h


if __name__ == "__main__":
    # Small shapes consistent with the module: Conv1d/BatchNorm1d expect (N,C,L)
    N, C, L, K = 2, 4, 16, 3          # in_channels = out_channels = 4, k = 3
    key = jax.random.PRNGKey(0)
    kx, kg, kb, kw1, kb1, kw2, kb2 = jax.random.split(key, 7)

    x = jax.random.normal(kx, (N, C, L), dtype=jnp.float32)
    gamma = 1.0 + 0.1 * jax.random.normal(kg, (C,), dtype=jnp.float32)
    beta = 0.1 * jax.random.normal(kb, (C,), dtype=jnp.float32)
    w1 = 0.2 * jax.random.normal(kw1, (C, C, K), dtype=jnp.float32)
    b1 = 0.1 * jax.random.normal(kb1, (C,), dtype=jnp.float32)
    w2 = 0.2 * jax.random.normal(kw2, (C, C, K), dtype=jnp.float32)
    b2 = 0.1 * jax.random.normal(kb2, (C,), dtype=jnp.float32)

    # Reference computed first (defensive vs. the input/output alias hint).
    ref = _reference(x, gamma, beta, w1, b1, w2, b2, K)
    ref = jax.block_until_ready(ref)

    out = resblock_for_mfl(x, gamma, beta, w1, b1, w2, b2)
    out = jax.block_until_ready(out)

    assert out.shape == ref.shape == (N, C, L)
    assert bool(jnp.allclose(out, ref, atol=1e-4, rtol=1e-4)), \
        "mismatch vs reference"

    print("KERNEL_OK")
</pallas_src>

<mosaic_0001>
module attributes {stable_mosaic.version = 11 : i64} {
  func.func @bn_stats_kernel(%arg0: i32, %arg1: memref<1x4x16xf32, #tpu.memory_space<vmem>>, %arg2: memref<4x1xf32, #tpu.memory_space<vmem>>, %arg3: memref<4x1xf32, #tpu.memory_space<vmem>>) attributes {dimension_semantics = [#tpu.dimension_semantics<arbitrary>], iteration_bounds = array<i64: 2>, scalar_prefetch = 0 : i64, scratch_operands = 0 : i64, tpu.core_type = #tpu.core_type<tc>, window_params = [{transform_indices = @transform_0, window_bounds = array<i64: 1, 4, 16>}, {pipeline_mode = #tpu.pipeline_mode<synchronous>, transform_indices = @transform_1, window_bounds = array<i64: 4, 1>}, {pipeline_mode = #tpu.pipeline_mode<synchronous>, transform_indices = @transform_2, window_bounds = array<i64: 4, 1>}]} {
    %c0_i32 = arith.constant 0 : i32
    %0 = arith.cmpi eq, %arg0, %c0_i32 : i32
    %1 = arith.extui %0 : i1 to i32
    %c0_i32_0 = arith.constant 0 : i32
    %2 = arith.cmpi ne, %1, %c0_i32_0 : i32
    scf.if %2 {
      %cst_13 = arith.constant 0.000000e+00 : f32
      %19 = vector.broadcast %cst_13 : f32 to vector<4x1xf32>
      %c0_14 = arith.constant 0 : index
      %c0_15 = arith.constant 0 : index
      %20 = vector.load %arg2[%c0_14, %c0_15] : memref<4x1xf32, #tpu.memory_space<vmem>>, vector<4x1xf32>
      tpu.vector_store %arg2[%c0_14, %c0_15], %19 {strides = array<i32>} : memref<4x1xf32, #tpu.memory_space<vmem>>, vector<4x1xf32>,
      %cst_16 = arith.constant 0.000000e+00 : f32
      %21 = vector.broadcast %cst_16 : f32 to vector<4x1xf32>
      %c0_17 = arith.constant 0 : index
      %c0_18 = arith.constant 0 : index
      %22 = vector.load %arg3[%c0_17, %c0_18] : memref<4x1xf32, #tpu.memory_space<vmem>>, vector<4x1xf32>
      tpu.vector_store %arg3[%c0_17, %c0_18], %21 {strides = array<i32>} : memref<4x1xf32, #tpu.memory_space<vmem>>, vector<4x1xf32>,
    } else {
    }
    %c0 = arith.constant 0 : index
    %c0_1 = arith.constant 0 : index
    %c0_2 = arith.constant 0 : index
    %3 = vector.load %arg1[%c0, %c0_1, %c0_2] : memref<1x4x16xf32, #tpu.memory_space<vmem>>, vector<1x4x16xf32>
    %4 = vector.shape_cast %3 : vector<1x4x16xf32> to vector<4x16xf32>
    %c0_3 = arith.constant 0 : index
    %c0_4 = arith.constant 0 : index
    %5 = vector.load %arg2[%c0_3, %c0_4] : memref<4x1xf32, #tpu.memory_space<vmem>>, vector<4x1xf32>
    %cst = arith.constant dense<0.000000e+00> : vector<4xf32>
    %6 = vector.multi_reduction <add>, %4, %cst [1] : vector<4x16xf32> to vector<4xf32>
    %7 = vector.shape_cast %6 : vector<4xf32> to vector<4x1xf32>
    %8 = arith.addf %5, %7 : vector<4x1xf32>
    %c0_5 = arith.constant 0 : index
    %c0_6 = arith.constant 0 : index
    %9 = vector.load %arg2[%c0_5, %c0_6] : memref<4x1xf32, #tpu.memory_space<vmem>>, vector<4x1xf32>
    tpu.vector_store %arg2[%c0_5, %c0_6], %8 {strides = array<i32>} : memref<4x1xf32, #tpu.memory_space<vmem>>, vector<4x1xf32>,
    %c0_7 = arith.constant 0 : index
    %c0_8 = arith.constant 0 : index
    %10 = vector.load %arg3[%c0_7, %c0_8] : memref<4x1xf32, #tpu.memory_space<vmem>>, vector<4x1xf32>
    %11 = arith.mulf %4, %4 : vector<4x16xf32>
    %cst_9 = arith.constant dense<0.000000e+00> : vector<4xf32>
    %12 = vector.multi_reduction <add>, %11, %cst_9 [1] : vector<4x16xf32> to vector<4xf32>
    %13 = vector.shape_cast %12 : vector<4xf32> to vector<4x1xf32>
    %14 = arith.addf %10, %13 : vector<4x1xf32>
    %c0_10 = arith.constant 0 : index
    %c0_11 = arith.constant 0 : index
    %15 = vector.load %arg3[%c0_10, %c0_11] : memref<4x1xf32, #tpu.memory_space<vmem>>, vector<4x1xf32>
    tpu.vector_store %arg3[%c0_10, %c0_11], %14 {strides = array<i32>} : memref<4x1xf32, #tpu.memory_space<vmem>>, vector<4x1xf32>,
    %c1_i32 = arith.constant 1 : i32
    %16 = arith.cmpi eq, %arg0, %c1_i32 : i32
    %17 = arith.extui %16 : i1 to i32
    %c0_i32_12 = arith.constant 0 : i32
    %18 = arith.cmpi ne, %17, %c0_i32_12 : i32
    scf.if %18 {
      %c0_13 = arith.constant 0 : index
      %c0_14 = arith.constant 0 : index
      %19 = vector.load %arg2[%c0_13, %c0_14] : memref<4x1xf32, #tpu.memory_space<vmem>>, vector<4x1xf32>
      %cst_15 = arith.constant 3.125000e-02 : f32
      %20 = vector.broadcast %cst_15 : f32 to vector<4x1xf32>
      %21 = arith.mulf %19, %20 : vector<4x1xf32>
      %c0_16 = arith.constant 0 : index
      %c0_17 = arith.constant 0 : index
      %22 = vector.load %arg3[%c0_16, %c0_17] : memref<4x1xf32, #tpu.memory_space<vmem>>, vector<4x1xf32>
      %cst_18 = arith.constant 3.125000e-02 : f32
      %23 = vector.broadcast %cst_18 : f32 to vector<4x1xf32>
      %24 = arith.mulf %22, %23 : vector<4x1xf32>
      %25 = arith.mulf %21, %21 : vector<4x1xf32>
      %26 = arith.subf %24, %25 : vector<4x1xf32>
      %c0_19 = arith.constant 0 : index
      %c0_20 = arith.constant 0 : index
      %27 = vector.load %arg2[%c0_19, %c0_20] : memref<4x1xf32, #tpu.memory_space<vmem>>, vector<4x1xf32>
      tpu.vector_store %arg2[%c0_19, %c0_20], %21 {strides = array<i32>} : memref<4x1xf32, #tpu.memory_space<vmem>>, vector<4x1xf32>,
      %cst_21 = arith.constant 9.99999974E-6 : f32
      %28 = vector.broadcast %cst_21 : f32 to vector<4x1xf32>
      %29 = arith.addf %26, %28 : vector<4x1xf32>
      %30 = math.rsqrt %29 : vector<4x1xf32>
      %c0_22 = arith.constant 0 : index
      %c0_23 = arith.constant 0 : index
      %31 = vector.load %arg3[%c0_22, %c0_23] : memref<4x1xf32, #tpu.memory_space<vmem>>, vector<4x1xf32>
      tpu.vector_store %arg3[%c0_22, %c0_23], %30 {strides = array<i32>} : memref<4x1xf32, #tpu.memory_space<vmem>>, vector<4x1xf32>,
    } else {
    }
    return
  }
  func.func @transform_0(%arg0: i32) -> (i32, i32, i32) {
    %c0_i32 = arith.constant 0 : i32
    %c0_i32_0 = arith.constant 0 : i32
    %c0_i32_1 = arith.constant 0 : i32
    return %arg0, %c0_i32, %c0_i32_0 : i32, i32, i32
  }
  func.func @transform_1(%arg0: i32) -> (i32, i32) {
    %c0_i32 = arith.constant 0 : i32
    %c0_i32_0 = arith.constant 0 : i32
    %c0_i32_1 = arith.constant 0 : i32
    return %c0_i32, %c0_i32_0 : i32, i32
  }
  func.func @transform_2(%arg0: i32) -> (i32, i32) {
    %c0_i32 = arith.constant 0 : i32
    %c0_i32_0 = arith.constant 0 : i32
    %c0_i32_1 = arith.constant 0 : i32
    return %c0_i32, %c0_i32_0 : i32, i32
  }
}

</mosaic_0001>

<llo_original>
// kernel: tpu_custom_call.1
$region0: #{tpu_custom_call.1}
  #allocation0 [shape = 'u32[]', space=smem, size = 0x4, offset = 0x4, fixed_abs, tag = 'smem constant byte address 0x4 - core index']
  #allocation1 [shape = 'u32[144,128]{1,0:T(1,128)}', space=vmem, size = 0x12000, scoped, tag = 'internal scratch']
  %s0 = inlined_call_operand.hbm [shape: f32[2,4,16], index: 0, kind: input, shape index: {}]
  %s1 = inlined_call_operand.vmem [shape: f32[4,1], index: 1, kind: output, shape index: {0}]
  %s2 = inlined_call_operand.vmem [shape: f32[4,1], index: 2, kind: output, shape index: {1}]
  %3 = xla_tuple %s1, %s2
  %s4 = sld [smem:[#allocation0]]
  $region57: #{tpu_custom_call.1} parent=0
    _
  %s6 = ssub.s32 1, %s4
  %s7 = scalar_select 0, %s6, %s4
  $region1: #{tpu_custom_call.1} parent=0
    #allocation2 [shape = 'u8[4096]{0}', space=vmem, size = 0x1000, scoped, tag = 'input window, operand 0']
    #allocation3 [shape = 's32[2]{0}', space=sflag, size = 0x8, scoped, tag = 'scoped memory for tpu_custom_call.1']
    %8 = vsyncpa [#allocation3], 0
    %s9 = scalar_lea.sflag [#allocation3], 1
    %10 = vsyncpa %s9, 0
    loop: start=0, step=1, limit=4
    $region2: #{tpu_custom_call.1} parent=1 // loop_pre_header
      _
    $region3: #{tpu_custom_call.1} parent=1 // loop_header
      %s12 = sphi 0, %s16
      %p13 = scmp.ge.s32.totalorder %s12, 4
      %s22 = sphi 0, %s24
      %s25 = sphi 0, %s22
      %s26 = sphi 0, %s25
      %s42 = sphi 0, %s26
      %s46 = sphi 0, %s46
      %s48 = sphi 0, %s46
      %s49 = sphi 0, %s48
      %s63 = sphi 0, %s49
      %s67 = sphi 0, %s67
      %s69 = sphi 0, %s67
      %s70 = sphi 0, %s69
      %s84 = sphi 0, %s70
    $region4: #{tpu_custom_call.1} parent=1 // loop_header_branch
      %15 = sbr.rel (%p13) target = $region8
    $region5: #{tpu_custom_call.1} parent=1 // loop_body
      %s17 = ssub.s32 %s12, 1
      %s18 = ssub.s32 %s12, 2
      %s19 = sadd.s32 %s12, 1
      %s20 = ssub.s32 %s12, %s19
      %p21 = scmp.eq.s32.totalorder %s20, 0
      %s23 = sadd.s32 %s22, 1
      %s24 = scalar_select %p21, %s22, %s23
      %p27 = pneg %p21
      %p28 = scmp.eq.s32.totalorder %s12, 1
      %p29 = por %p27, %p28
      %p30 = scmp.ne.s32.totalorder %s22, %s25
      %p31 = scmp.eq.s32.totalorder %s12, 0
      %p32 = por %p30, %p31
      %p33 = scmp.ne.s32.totalorder %s22, %s25
      %p34 = scmp.eq.s32.totalorder %s17, 1
      %p35 = por %p33, %p34
      %p36 = scmp.ne.s32.totalorder %s25, %s26
      %p37 = scmp.eq.s32.totalorder %s17, 0
      %p38 = por %p36, %p37
      %p39 = scmp.ne.s32.totalorder %s25, %s26
      %p40 = scmp.eq.s32.totalorder %s18, 1
      %p41 = por %p39, %p40
      %p43 = scmp.ne.s32.totalorder %s26, %s42
      %p44 = scmp.eq.s32.totalorder %s18, 0
      %p45 = por %p43, %p44
      %s47 = sadd.s32 %s46, 1
      %p50 = scmp.eq.s32.totalorder %s12, 1
      %p51 = scmp.ne.s32.totalorder %s46, %s48
      %p52 = scmp.eq.s32.totalorder %s12, 0
      %p53 = por %p51, %p52
      %p54 = scmp.ne.s32.totalorder %s46, %s48
      %p55 = scmp.eq.s32.totalorder %s17, 1
      %p56 = por %p54, %p55
      %p57 = scmp.ne.s32.totalorder %s48, %s49
      %p58 = scmp.eq.s32.totalorder %s17, 0
      %p59 = por %p57, %p58
      %p60 = scmp.ne.s32.totalorder %s48, %s49
      %p61 = scmp.eq.s32.totalorder %s18, 1
      %p62 = por %p60, %p61
      %p64 = scmp.ne.s32.totalorder %s49, %s63
      %p65 = scmp.eq.s32.totalorder %s18, 0
      %p66 = por %p64, %p65
      %s68 = sadd.s32 %s67, 1
      %p71 = scmp.eq.s32.totalorder %s12, 1
      %p72 = scmp.ne.s32.totalorder %s67, %s69
      %p73 = scmp.eq.s32.totalorder %s12, 0
      %p74 = por %p72, %p73
      %p75 = scmp.ne.s32.totalorder %s67, %s69
      %p76 = scmp.eq.s32.totalorder %s17, 1
      %p77 = por %p75, %p76
      %p78 = scmp.ne.s32.totalorder %s69, %s70
      %p79 = scmp.eq.s32.totalorder %s17, 0
      %p80 = por %p78, %p79
      %p81 = scmp.ne.s32.totalorder %s69, %s70
      %p82 = scmp.eq.s32.totalorder %s18, 1
      %p83 = por %p81, %p82
      %p85 = scmp.ne.s32.totalorder %s70, %s84
      %p86 = scmp.eq.s32.totalorder %s18, 0
      %p87 = por %p85, %p86
      %p88 = scmp.le.s32.totalorder 1, %s12
      %p89 = scmp.lt.s32.totalorder %s12, 3
      %p90 = pnand %p88, %p89
      %p91 = pneg %p90
      // Predicated region
      $region9: #{tpu_custom_call.1} parent=5 // pred_check
        _
      $region10: #{tpu_custom_call.1} parent=5 // pred_check_branch
        %93 = sbr.rel (%p90) target = $region12
      $region11: #{tpu_custom_call.1} parent=5 // pred_region
        %s94 = ssub.s32 %s12, 1
      $region12: #{tpu_custom_call.1} parent=5 // pred_fallthru
        _
      %p95 = scmp.lt.s32.totalorder %s12, 2
      // Predicated region
      $region13: #{tpu_custom_call.1} parent=5 // pred_check
        %p96 = pneg %p95
      $region14: #{tpu_custom_call.1} parent=5 // pred_check_branch
        %98 = sbr.rel (%p96) target = $region16
      $region15: #{tpu_custom_call.1} parent=5 // pred_region
        // Predicated region
        $region17: #{tpu_custom_call.1} parent=15 // pred_check
          %p99 = pneg %p32
        $region18: #{tpu_custom_call.1} parent=15 // pred_check_branch
          %101 = sbr.rel (%p99) target = $region20
        $region19: #{tpu_custom_call.1} parent=15 // pred_region
          %s102 = sand.u32 %s22, 1
          %s103 = scalar_lea.sflag [#allocation3], %s102
          %s104 = sand.u32 %s22, 1
          %s105 = smul.addr %s104, 4
          %s106 = scalar_lea.vmem [#allocation2], %s105
          %s108 = ssub.s32 64, 64
          %109 = vsyncadd %s103, %s108
          %s110 = smul.addr %s12, 64
          %s111 = scalar_lea.hbm %s0, %s110
          %s113 = sshll.u32 %s106, 4
          %s114 = int_to_ptr.vmem [resolvable:$true] %s113
          %116 = dma.hbm_to_vmem [thread:$0]  %s111, 64, %s114, %s103
        $region20: #{tpu_custom_call.1} parent=15 // pred_fallthru
          _
      $region16: #{tpu_custom_call.1} parent=5 // pred_fallthru
        _
      %p117 = scmp.le.s32.totalorder 1, %s12
      %p118 = scmp.lt.s32.totalorder %s12, 3
      %p119 = pnand %p117, %p118
      %p120 = pneg %p119
      // Predicated region
      $region21: #{tpu_custom_call.1} parent=5 // pred_check
        _
      $region22: #{tpu_custom_call.1} parent=5 // pred_check_branch
        %122 = sbr.rel (%p119) target = $region24
      $region23: #{tpu_custom_call.1} parent=5 // pred_region
        %s123 = ssub.s32 %s12, 1
        %s124 = sand.u32 %s25, 1
        %s125 = scalar_lea.sflag [#allocation3], %s124
        %s126 = sand.u32 %s25, 1
        %s127 = smul.addr %s126, 4
        %s128 = scalar_lea.vmem [#allocation2], %s127
        // Predicated region
        $region25: #{tpu_custom_call.1} parent=23 // pred_check
          %p129 = pneg %p38
        $region26: #{tpu_custom_call.1} parent=23 // pred_check_branch
          %131 = sbr.rel (%p129) target = $region28
        $region27: #{tpu_custom_call.1} parent=23 // pred_region
          %132 = dma.done %s125, 64
        $region28: #{tpu_custom_call.1} parent=23 // pred_fallthru
          _
        %s133 = sand.u32 %s25, 1
        %s134 = scalar_lea.sflag [#allocation3], %s133
        %s135 = sand.u32 %s25, 1
        %s136 = smul.addr %s135, 4
        %s137 = scalar_lea.vmem [#allocation2], %s136
        %p138 = pneg %p38
        %p139 = pneg %p35
        %p140 = pneg %p59
        %p141 = pneg %p56
        %p142 = pneg %p80
        %p143 = pneg %p77
        %p144 = scmp.eq.s32.totalorder %s17, 0
        // Predicated region
        $region29: #{tpu_custom_call.1} parent=23 // pred_check
          %p145 = pneg %p144
        $region30: #{tpu_custom_call.1} parent=23 // pred_check_branch
          %147 = sbr.rel (%p145) target = $region32
        $region31: #{tpu_custom_call.1} parent=23 // pred_region
          %vm148 = vcmask 3072
          %149 = vst.msk [vmem:[%s1] sm:$0xf] %vm148, 0.0
          %150 = vst.msk [vmem:[%s2] sm:$0xf] %vm148, 0.0
        $region32: #{tpu_custom_call.1} parent=23 // pred_fallthru
          _
        %v151 = vld [vmem:[%s128] sm:$0xf]
        %v152 = vld [vmem:[%s1] sm:$0xf]
        %vm153 = vcmask 125952
        %v154 = vsel %vm153, %v151, 0.0
        %155 = vadd.xlane.f32.xlu0 %v154
        %v156 = vpop.xlane.xlu0 %155
        %v157 = vadd.f32 %v152, %v156
        %vm158 = vcmask 3072
        %159 = vst.msk [vmem:[%s1] sm:$0xf] %vm158, %v157
        %v160 = vld [vmem:[%s2] sm:$0xf]
        %v161 = vmul.f32 %v151, %v151
        %v162 = vsel %vm153, %v161, 0.0
        %163 = vadd.xlane.f32.xlu0 %v162
        %v164 = vpop.xlane.xlu0 %163
        %v165 = vadd.f32 %v160, %v164
        %166 = vst.msk [vmem:[%s2] sm:$0xf] %vm158, %v165
        %p167 = scmp.eq.s32.totalorder %s17, 1
        // Predicated region
        $region33: #{tpu_custom_call.1} parent=23 // pred_check
          %p168 = pneg %p167
        $region34: #{tpu_custom_call.1} parent=23 // pred_check_branch
          %170 = sbr.rel (%p168) target = $region36
        $region35: #{tpu_custom_call.1} parent=23 // pred_region
          %v171 = vld [vmem:[%s1] sm:$0xf]
          %v172 = vmul.f32 %v171, 0.03125
          %v173 = vld [vmem:[%s2] sm:$0xf]
          %v174 = vmul.f32 %v173, 0.03125
          %v175 = vmul.f32 %v172, %v172
          %v176 = vsub.f32 %v174, %v175
          %177 = vst.msk [vmem:[%s1] sm:$0xf] %vm158, %v172
          %v178 = vadd.f32 %v176, 1e-05
          %v179 = vrsqrt.pop %v178
          %180 = vst.msk [vmem:[%s2] sm:$0xf] %vm158, %v179
        $region36: #{tpu_custom_call.1} parent=23 // pred_fallthru
          _
        // Predicated region
        $region37: #{tpu_custom_call.1} parent=23 // pred_check
          %p181 = pneg %p56
        $region38: #{tpu_custom_call.1} parent=23 // pred_check_branch
          %183 = sbr.rel (%p181) target = $region40
        $region39: #{tpu_custom_call.1} parent=23 // pred_region
          _
        $region40: #{tpu_custom_call.1} parent=23 // pred_fallthru
          _
        // Predicated region
        $region41: #{tpu_custom_call.1} parent=23 // pred_check
          %p184 = pneg %p77
        $region42: #{tpu_custom_call.1} parent=23 // pred_check_branch
          %186 = sbr.rel (%p184) target = $region44
        $region43: #{tpu_custom_call.1} parent=23 // pred_region
          _
        $region44: #{tpu_custom_call.1} parent=23 // pred_fallthru
          _
        // Predicated region
        $region45: #{tpu_custom_call.1} parent=23 // pred_check
          %p187 = pneg %p56
        $region46: #{tpu_custom_call.1} parent=23 // pred_check_branch
          %189 = sbr.rel (%p187) target = $region48
        $region47: #{tpu_custom_call.1} parent=23 // pred_region
          _
        $region48: #{tpu_custom_call.1} parent=23 // pred_fallthru
          _
        // Predicated region
        $region49: #{tpu_custom_call.1} parent=23 // pred_check
          %p190 = pneg %p77
        $region50: #{tpu_custom_call.1} parent=23 // pred_check_branch
          %192 = sbr.rel (%p190) target = $region52
        $region51: #{tpu_custom_call.1} parent=23 // pred_region
          _
        $region52: #{tpu_custom_call.1} parent=23 // pred_fallthru
          _
      $region24: #{tpu_custom_call.1} parent=5 // pred_fallthru
        _
      %p193 = scmp.le.s32.totalorder 2, %s12
      // Predicated region
      $region53: #{tpu_custom_call.1} parent=5 // pred_check
        %p194 = pneg %p193
      $region54: #{tpu_custom_call.1} parent=5 // pred_check_branch
        %196 = sbr.rel (%p194) target = $region56
      $region55: #{tpu_custom_call.1} parent=5 // pred_region
        %s197 = ssub.s32 %s12, 2
      $region56: #{tpu_custom_call.1} parent=5 // pred_fallthru
        _
    $region6: #{tpu_custom_call.1} parent=1 // loop_footer
      %s16 = sadd.s32 1, %s12
    $region7: #{tpu_custom_call.1} parent=1 // loop_footer_branch
      %11 = sbr.rel target = $region3
    $region8: #{tpu_custom_call.1} parent=1 // loop_exit
      _
    %198 = vsyncpa [#allocation3], 1
    %s199 = scalar_lea.sflag [#allocation3], 1
    %200 = vsyncpa %s199, 1

</llo_original>
